<compile_context>
chip_gen: v5e
topology: v5e:2x2
jax: 0.10.0
libtpu: 0.0.40
codegen_flags: <defaults>
</compile_context>

<pallas_src>
import functools

import jax
import jax.numpy as jnp
from jax.experimental import pallas as pl
from jax.experimental.pallas import tpu as pltpu

EPS = 1e-5


def _basic_block_kernel(seed_ref, x_ref, w_ref, g_ref, beta_ref, o_ref,
                        *, p, d_out, tile_n):
    j = pl.program_id(0)

    # ---- Linear (bias omitted: training-mode BN subtracts the batch mean,
    # which cancels any per-feature additive bias exactly). bf16 in, f32 acc. ----
    y = jnp.dot(x_ref[...], w_ref[...], preferred_element_type=jnp.float32)

    # ---- BatchNorm1d (training mode): per-feature batch stats, biased var ----
    mean = jnp.mean(y, axis=0, keepdims=True)
    var = jnp.mean((y - mean) ** 2, axis=0, keepdims=True)
    s = g_ref[...] * jax.lax.rsqrt(var + EPS)   # (1, TN) per-feature scale
    t = beta_ref[...] - mean * s                # (1, TN) per-feature shift

    # Fold dropout survivor scale 1/(1-p) into the affine (ReLU commutes with
    # a positive scale), so dropout below is a bare select.
    if p > 0.0:
        inv_keep = 1.0 / (1.0 - p)
        s = s * inv_keep
        t = t * inv_keep

    # ---- fused BN affine + ReLU ----
    z = jnp.maximum(y * s + t, 0.0)

    # ---- Dropout(p), training mode ----
    if p > 0.0:
        # Stateless counter-based hash (murmur3 finalizer) -> uint32 bits,
        # thresholded directly: keep probability is exactly (1 - p).
        # TODO(synk): statistically equivalent to torch.nn.Dropout but not
        # bit-identical to torch's RNG stream.
        bsz, tn = z.shape
        row = jax.lax.broadcasted_iota(jnp.int32, (bsz, tn), 0).astype(jnp.uint32)
        col = jax.lax.broadcasted_iota(jnp.int32, (bsz, tn), 1).astype(jnp.uint32)
        col_g = col + jnp.uint32(tile_n) * j.astype(jnp.uint32)
        idx = row * jnp.uint32(d_out) + col_g            # unique per output element
        h = idx + seed_ref[0].astype(jnp.uint32) * jnp.uint32(0x7F4A7C15)
        h = h ^ (h >> 16)
        h = h * jnp.uint32(0x85EBCA6B)
        h = h ^ (h >> 13)
        h = h * jnp.uint32(0xC2B2AE35)
        h = h ^ (h >> 16)
        thr = jnp.uint32(min(int(round(p * 4294967296.0)), 4294967295))
        z = jnp.where(h >= thr, z, 0.0)

    o_ref[...] = z.astype(o_ref.dtype)


def _vmem_estimate(batch, d_in, tile_n):
    # resident bf16 x block + double-buffered (bf16 W tile, f32 out tile, vecs)
    return batch * d_in * 2 + 2 * (d_in * tile_n * 2 + batch * tile_n * 4
                                   + 2 * tile_n * 4)


def _choose_tile_n(d_out, d_in, batch, vmem_budget_bytes=24 * 1024 * 1024):
    """Largest feature tile that fits the VMEM budget (fewest grid steps)."""
    if _vmem_estimate(batch, d_in, d_out) <= vmem_budget_bytes:
        return d_out
    cands = [t for t in range(128, d_out, 128)
             if d_out % t == 0 and _vmem_estimate(batch, d_in, t) <= vmem_budget_bytes]
    return max(cands) if cands else 128


def basic_block03(x, w, b, gamma, beta, seed, *, p=0.5, tile_n=None):
    """Linear -> BatchNorm1d(train) -> ReLU -> Dropout(p, train).

    `b` (the Linear bias) is accepted for parameter parity but unused: the
    training-mode BatchNorm mean subtraction cancels it exactly, so dropping it
    is a mathematical no-op that saves one input DMA stream and a VPU add.
    """
    del b
    assert 0.0 <= p < 1.0, "supports dropout prob in [0, 1)"
    B, d_in = x.shape
    d_out = w.shape[1]

    gamma = jnp.asarray(gamma, jnp.float32).reshape(1, d_out)
    beta = jnp.asarray(beta, jnp.float32).reshape(1, d_out)
    seed = jnp.asarray(seed, jnp.int32).reshape(1)

    if tile_n is None:
        tile_n = _choose_tile_n(d_out, d_in, B)
    assert d_out % tile_n == 0, "output_dim must be a multiple of tile_n"
    grid = (d_out // tile_n,)

    # bf16 into the MXU (halves the dominant W HBM stream); f32 accumulate and
    # f32 elementwise tail.
    x_mm = x.astype(jnp.bfloat16)
    w_mm = w.astype(jnp.bfloat16)

    vmem_est = _vmem_estimate(B, d_in, tile_n)
    vmem_limit = (min(2 * vmem_est, 64 * 1024 * 1024)
                  if vmem_est > 16 * 1024 * 1024 else None)

    kernel = functools.partial(_basic_block_kernel, p=float(p),
                               d_out=d_out, tile_n=tile_n)

    return pl.pallas_call(
        kernel,
        out_shape=jax.ShapeDtypeStruct((B, d_out), jnp.float32),
        grid_spec=pltpu.PrefetchScalarGridSpec(
            num_scalar_prefetch=1,  # dropout seed lands in SMEM
            grid=grid,
            in_specs=[
                pl.BlockSpec((B, d_in), lambda j, s: (0, 0)),       # x (full)
                pl.BlockSpec((d_in, tile_n), lambda j, s: (0, j)),  # W tile
                pl.BlockSpec((1, tile_n), lambda j, s: (0, j)),     # gamma tile
                pl.BlockSpec((1, tile_n), lambda j, s: (0, j)),     # beta tile
            ],
            out_specs=pl.BlockSpec((B, tile_n), lambda j, s: (0, j)),
        ),
        compiler_params=pltpu.CompilerParams(
            dimension_semantics=("parallel",),
            vmem_limit_bytes=vmem_limit,
        ),
    )(seed, x_mm, w_mm, gamma, beta)


def _reference_no_dropout(x, w, gamma, beta):
    # Same bf16 matmul / f32 accumulate as the kernel; dropout off.
    y = jnp.dot(x.astype(jnp.bfloat16), w.astype(jnp.bfloat16),
                preferred_element_type=jnp.float32)
    mean = jnp.mean(y, axis=0, keepdims=True)
    var = jnp.mean((y - mean) ** 2, axis=0, keepdims=True)
    y = (y - mean) * jax.lax.rsqrt(var + EPS)
    y = y * gamma.reshape(1, -1) + beta.reshape(1, -1)
    return jnp.maximum(y, 0.0)


if __name__ == "__main__":
    # Small shapes implied by Linear(input_dim, output_dim) on a (B, input_dim) batch.
    B, D_IN, D_OUT = 16, 32, 256
    P = 0.5

    key = jax.random.PRNGKey(0)
    kx, kw, kb = jax.random.split(key, 3)

    x = jax.random.normal(kx, (B, D_IN), dtype=jnp.float32)
    # PyTorch Linear default init: U(-1/sqrt(in), 1/sqrt(in))
    bound = 1.0 / float(D_IN) ** 0.5
    w = jax.random.uniform(kw, (D_IN, D_OUT), minval=-bound, maxval=bound,
                           dtype=jnp.float32)
    b = jax.random.uniform(kb, (1, D_OUT), minval=-bound, maxval=bound,
                           dtype=jnp.float32)  # unused (cancelled by training BN)
    gamma = jnp.ones((D_OUT,), dtype=jnp.float32)   # BatchNorm1d weight
    beta = jnp.zeros((D_OUT,), dtype=jnp.float32)   # BatchNorm1d bias
    seed = jnp.array([1234], dtype=jnp.int32)

    # Sanity: with p=0 dropout is identity; must match the plain-JAX reference.
    out_p0 = basic_block03(x, w, b, gamma, beta, seed, p=0.0)
    jax.block_until_ready(out_p0)
    ref = _reference_no_dropout(x, w, gamma, beta)
    assert out_p0.shape == (B, D_OUT)
    assert jnp.allclose(out_p0, ref, atol=1e-3, rtol=1e-3), "p=0 path mismatch"

    # Actual module config: p=0.5 dropout in training mode.
    out = basic_block03(x, w, b, gamma, beta, seed, p=P)
    jax.block_until_ready(out)
    assert out.shape == (B, D_OUT)
    assert bool(jnp.all(jnp.isfinite(out)))
    # ReLU zeros ~half, dropout zeros half of the rest -> zero fraction ~0.75.
    zero_frac = float(jnp.mean(out == 0.0))
    assert 0.4 < zero_frac < 0.99, f"unexpected dropout zero fraction {zero_frac}"

    print("KERNEL_OK")
</pallas_src>

<mosaic_0001>
module attributes {stable_mosaic.version = 11 : i64} {
  func.func @_basic_block_kernel(%arg0: i32, %arg1: memref<1xi32, #tpu.memory_space<smem>>, %arg2: memref<16x32xbf16, #tpu.memory_space<vmem>>, %arg3: memref<32x256xbf16, #tpu.memory_space<vmem>>, %arg4: memref<1x256xf32, #tpu.memory_space<vmem>>, %arg5: memref<1x256xf32, #tpu.memory_space<vmem>>, %arg6: memref<16x256xf32, #tpu.memory_space<vmem>>) attributes {dimension_semantics = [#tpu.dimension_semantics<parallel>], iteration_bounds = array<i64: 1>, scalar_prefetch = 1 : i64, scratch_operands = 0 : i64, tpu.core_type = #tpu.core_type<tc>, window_params = [{pipeline_mode = #tpu.pipeline_mode<synchronous>, transform_indices = @transform_0, window_bounds = array<i64: 16, 32>}, {transform_indices = @transform_1, window_bounds = array<i64: 32, 256>}, {transform_indices = @transform_2, window_bounds = array<i64: 1, 256>}, {transform_indices = @transform_3, window_bounds = array<i64: 1, 256>}, {transform_indices = @transform_4, window_bounds = array<i64: 16, 256>}]} {
    %c0 = arith.constant 0 : index
    %c0_0 = arith.constant 0 : index
    %0 = vector.load %arg2[%c0, %c0_0] : memref<16x32xbf16, #tpu.memory_space<vmem>>, vector<16x32xbf16>
    %c0_1 = arith.constant 0 : index
    %c0_2 = arith.constant 0 : index
    %1 = vector.load %arg3[%c0_1, %c0_2] : memref<32x256xbf16, #tpu.memory_space<vmem>>, vector<32x256xbf16>
    %cst = arith.constant dense<0.000000e+00> : vector<16x256xf32>
    %2 = tpu.matmul %0, %1, %cst {dimension_numbers = #tpu.dot_dimension_numbers<[1], [0], [0], [1], [0, 0, 1, 1], [], []>} : vector<16x32xbf16>, vector<32x256xbf16>, vector<16x256xf32> -> vector<16x256xf32>
    %cst_3 = arith.constant dense<0.000000e+00> : vector<256xf32>
    %3 = vector.multi_reduction <add>, %2, %cst_3 [0] : vector<16x256xf32> to vector<256xf32>
    %4 = vector.shape_cast %3 : vector<256xf32> to vector<1x256xf32>
    %cst_4 = arith.constant 1.600000e+01 : f32
    %5 = vector.broadcast %cst_4 : f32 to vector<1x256xf32>
    %6 = arith.divf %4, %5 : vector<1x256xf32>
    %7 = vector.broadcast %6 : vector<1x256xf32> to vector<16x256xf32>
    %8 = arith.subf %2, %7 : vector<16x256xf32>
    %9 = arith.mulf %8, %8 : vector<16x256xf32>
    %cst_5 = arith.constant dense<0.000000e+00> : vector<256xf32>
    %10 = vector.multi_reduction <add>, %9, %cst_5 [0] : vector<16x256xf32> to vector<256xf32>
    %11 = vector.shape_cast %10 : vector<256xf32> to vector<1x256xf32>
    %cst_6 = arith.constant 1.600000e+01 : f32
    %12 = vector.broadcast %cst_6 : f32 to vector<1x256xf32>
    %13 = arith.divf %11, %12 : vector<1x256xf32>
    %c0_7 = arith.constant 0 : index
    %c0_8 = arith.constant 0 : index
    %14 = vector.load %arg4[%c0_7, %c0_8] : memref<1x256xf32, #tpu.memory_space<vmem>>, vector<1x256xf32>
    %cst_9 = arith.constant 9.99999974E-6 : f32
    %15 = vector.broadcast %cst_9 : f32 to vector<1x256xf32>
    %16 = arith.addf %13, %15 : vector<1x256xf32>
    %17 = math.rsqrt %16 : vector<1x256xf32>
    %18 = arith.mulf %14, %17 : vector<1x256xf32>
    %c0_10 = arith.constant 0 : index
    %c0_11 = arith.constant 0 : index
    %19 = vector.load %arg5[%c0_10, %c0_11] : memref<1x256xf32, #tpu.memory_space<vmem>>, vector<1x256xf32>
    %20 = arith.mulf %6, %18 : vector<1x256xf32>
    %21 = arith.subf %19, %20 : vector<1x256xf32>
    %22 = vector.broadcast %18 : vector<1x256xf32> to vector<16x256xf32>
    %23 = arith.mulf %2, %22 : vector<16x256xf32>
    %24 = vector.broadcast %21 : vector<1x256xf32> to vector<16x256xf32>
    %25 = arith.addf %23, %24 : vector<16x256xf32>
    %cst_12 = arith.constant 0.000000e+00 : f32
    %26 = vector.broadcast %cst_12 : f32 to vector<16x256xf32>
    %27 = arith.maximumf %25, %26 : vector<16x256xf32>
    %c0_13 = arith.constant 0 : index
    %c0_14 = arith.constant 0 : index
    %28 = vector.load %arg6[%c0_13, %c0_14] : memref<16x256xf32, #tpu.memory_space<vmem>>, vector<16x256xf32>
    tpu.vector_store %arg6[%c0_13, %c0_14], %27 {strides = array<i32>} : memref<16x256xf32, #tpu.memory_space<vmem>>, vector<16x256xf32>,
    return
  }
  func.func @transform_0(%arg0: i32, %arg1: memref<1xi32, #tpu.memory_space<smem>>) -> (i32, i32) {
    %c0_i32 = arith.constant 0 : i32
    %c0_i32_0 = arith.constant 0 : i32
    %c0_i32_1 = arith.constant 0 : i32
    return %c0_i32, %c0_i32_0 : i32, i32
  }
  func.func @transform_1(%arg0: i32, %arg1: memref<1xi32, #tpu.memory_space<smem>>) -> (i32, i32) {
    %c0_i32 = arith.constant 0 : i32
    %c0_i32_0 = arith.constant 0 : i32
    return %c0_i32, %arg0 : i32, i32
  }
  func.func @transform_2(%arg0: i32, %arg1: memref<1xi32, #tpu.memory_space<smem>>) -> (i32, i32) {
    %c0_i32 = arith.constant 0 : i32
    %c0_i32_0 = arith.constant 0 : i32
    return %c0_i32, %arg0 : i32, i32
  }
  func.func @transform_3(%arg0: i32, %arg1: memref<1xi32, #tpu.memory_space<smem>>) -> (i32, i32) {
    %c0_i32 = arith.constant 0 : i32
    %c0_i32_0 = arith.constant 0 : i32
    return %c0_i32, %arg0 : i32, i32
  }
  func.func @transform_4(%arg0: i32, %arg1: memref<1xi32, #tpu.memory_space<smem>>) -> (i32, i32) {
    %c0_i32 = arith.constant 0 : i32
    %c0_i32_0 = arith.constant 0 : i32
    return %c0_i32, %arg0 : i32, i32
  }
}

</mosaic_0001>

<llo_original>
// kernel: tpu_custom_call.1
$region0: #{tpu_custom_call.1}
  #allocation0 [shape = 'u32[]', space=smem, size = 0x4, offset = 0x4, fixed_abs, tag = 'smem constant byte address 0x4 - core index']
  #allocation1 [shape = 'u32[72,128]{1,0:T(1,128)}', space=vmem, size = 0x9000, scoped, tag = 'internal scratch']
  #allocation2 [shape = 's32[1]{0}', space=sflag, size = 0x4, scoped, tag = 'scoped memory for tpu_custom_call.1']
  #allocation3 [shape = 's32[1]{0:T(128)S(6)}', space=smem, size = 0x200, scoped, tag = 'prefetched SMEM operand 0']
  %s0 = inlined_call_operand.<no memory space> [shape: s32[1], index: 0, kind: input, shape index: {}]
  %s1 = inlined_call_operand.hbm [shape: bf16[16,32], index: 1, kind: input, shape index: {}]
  %s2 = inlined_call_operand.hbm [shape: bf16[32,256], index: 2, kind: input, shape index: {}]
  %s3 = inlined_call_operand.vmem [shape: f32[1,256], index: 3, kind: input, shape index: {}]
  %s4 = inlined_call_operand.vmem [shape: f32[1,256], index: 4, kind: input, shape index: {}]
  %s5 = inlined_call_operand.hbm [shape: f32[16,256], index: 5, kind: output, shape index: {}]
  %s6 = sld [smem:[#allocation0]]
  $region34: #{tpu_custom_call.1} parent=0
    _
  %s8 = ssub.s32 1, %s6
  %s9 = scalar_select 0, %s8, %s6
  %10 = sst [smem:[#allocation3]] %s0
  $region1: #{tpu_custom_call.1} parent=0
    #allocation4 [shape = 'u8[4096]{0}', space=vmem, size = 0x1000, scoped, tag = 'input window, operand 1, single buffered']
    #allocation5 [shape = 's32[1]{0}', space=sflag, size = 0x4, scoped, tag = 'scoped memory for tpu_custom_call.1']
    #allocation6 [shape = 's32[1]{0}', space=sflag, size = 0x4, scoped, tag = 'scoped memory for tpu_custom_call.1']
    #allocation7 [shape = 'u8[16384]{0}', space=vmem, size = 0x4000, scoped, tag = 'input window, operand 2, single buffered']
    #allocation8 [shape = 's32[1]{0}', space=sflag, size = 0x4, scoped, tag = 'scoped memory for tpu_custom_call.1']
    #allocation9 [shape = 'u8[16384]{0}', space=vmem, size = 0x4000, scoped, tag = 'output window, operand 0, single buffered']
    %11 = vsyncpa [#allocation5], 0
    %12 = vsyncpa [#allocation8], 0
    %13 = vsyncpa [#allocation6], 0
    // Predicated region
    $region2: #{tpu_custom_call.1} parent=1 // pred_check
      _
    $region3: #{tpu_custom_call.1} parent=1 // pred_check_branch
      %15 = sbr.rel (0) target = $region5
    $region4: #{tpu_custom_call.1} parent=1 // pred_region
      %17 = vsyncadd [#allocation5], 0
      %s18 = sshll.u32 %s1, 4
      %s19 = int_to_ptr.hbm [resolvable:$true] %s18
      %s20 = sshll.u32 [#allocation4], 4
      %s21 = int_to_ptr.vmem [resolvable:$true] %s20
      %26 = dma.hbm_to_vmem [thread:$0]  %s19, 128, %s21, [#allocation5], 64, 64, 4
    $region5: #{tpu_custom_call.1} parent=1 // pred_fallthru
      _
    // Predicated region
    $region6: #{tpu_custom_call.1} parent=1 // pred_check
      _
    $region7: #{tpu_custom_call.1} parent=1 // pred_check_branch
      %28 = sbr.rel (0) target = $region9
    $region8: #{tpu_custom_call.1} parent=1 // pred_region
      %30 = vsyncadd [#allocation8], 0
      %s31 = sshll.u32 %s2, 4
      %s32 = int_to_ptr.hbm [resolvable:$true] %s31
      %s33 = sshll.u32 [#allocation7], 4
      %s34 = int_to_ptr.vmem [resolvable:$true] %s33
      %39 = dma.hbm_to_vmem [thread:$0]  %s32, 512, %s34, [#allocation8], 128, 128, 8
    $region9: #{tpu_custom_call.1} parent=1 // pred_fallthru
      _
    // Predicated region
    $region10: #{tpu_custom_call.1} parent=1 // pred_check
      _
    $region11: #{tpu_custom_call.1} parent=1 // pred_check_branch
      %41 = sbr.rel (0) target = $region13
    $region12: #{tpu_custom_call.1} parent=1 // pred_region
      _
    $region13: #{tpu_custom_call.1} parent=1 // pred_fallthru
      _
    // Predicated region
    $region14: #{tpu_custom_call.1} parent=1 // pred_check
      _
    $region15: #{tpu_custom_call.1} parent=1 // pred_check_branch
      %43 = sbr.rel (0) target = $region17
    $region16: #{tpu_custom_call.1} parent=1 // pred_region
      _
    $region17: #{tpu_custom_call.1} parent=1 // pred_fallthru
      _
    // Predicated region
    $region18: #{tpu_custom_call.1} parent=1 // pred_check
      _
    $region19: #{tpu_custom_call.1} parent=1 // pred_check_branch
      %45 = sbr.rel (0) target = $region21
    $region20: #{tpu_custom_call.1} parent=1 // pred_region
      %47 = dma.done [#allocation5], 128
    $region21: #{tpu_custom_call.1} parent=1 // pred_fallthru
      _
    // Predicated region
    $region22: #{tpu_custom_call.1} parent=1 // pred_check
      _
    $region23: #{tpu_custom_call.1} parent=1 // pred_check_branch
      %49 = sbr.rel (0) target = $region25
    $region24: #{tpu_custom_call.1} parent=1 // pred_region
      %51 = dma.done [#allocation8], 512
    $region25: #{tpu_custom_call.1} parent=1 // pred_fallthru
      _
    %v53 = vld [vmem:[#allocation4] sm:$0xf]
    %v54 = vld [vmem:[#allocation4 + $0x4] sm:$0xf]
    %v55 = vld [vmem:[#allocation7] sm:$0xff]
    %v56 = vld [vmem:[#allocation7 + $0x8] sm:$0xff]
    %v57 = vld [vmem:[#allocation7 + $0x10] sm:$0xff]
    %v58 = vld [vmem:[#allocation7 + $0x18] sm:$0xff]
    %v61 = vunpack.c.l.b16 %v53
    %v62 = vunpack.c.l.b16 %v54
    %v63 = vpack.c.b16 %v62, %v61
    %v68 = vunpack.c.l.b16 %v55
    %v69 = vunpack.c.h.b16 %v55
    %v70 = vunpack.c.l.b16 %v56
    %v71 = vunpack.c.h.b16 %v56
    %v72 = vunpack.c.l.b16 %v57
    %v73 = vunpack.c.h.b16 %v57
    %v74 = vunpack.c.l.b16 %v58
    %v75 = vunpack.c.h.b16 %v58
    %v76 = vpack.c.b16 %v70, %v68
    %v77 = vpack.c.b16 %v71, %v69
    %v78 = vpack.c.b16 %v74, %v72
    %v79 = vpack.c.b16 %v75, %v73
    %vm84 = vcmask 261120
    %v86 = vsel %vm84, %v63, 0
    %88 = vmatpush.bf16.msra.mxu0 0
    %89 = vmatpush.bf16.msra.mxu0 0
    %90 = vmatpush.bf16.msra.mxu0 0
    %91 = vmatpush.bf16.msra.mxu0 0
    %92 = vmatpush.bf16.msra.mxu0 0
    %93 = vmatpush.bf16.msra.mxu0 0
    %94 = vmatpush.bf16.msra.mxu0 %v78
    %95 = vmatpush.bf16.msra.mxu0 %v76
    %96 = vmatmul.bf16.gmra.mxu0 %v86
    %v97 = vpop.f32.mrf.mxu0
    %v98 = vadd.f32 0.0, %v97
    %v99 = vpop.f32.mrf.mxu0
    %v100 = vadd.f32 0.0, %v99
    %101 = vdwg.mxu0
    %102 = vmatpush.bf16.msra.mxu0 0
    %103 = vmatpush.bf16.msra.mxu0 0
    %104 = vmatpush.bf16.msra.mxu0 0
    %105 = vmatpush.bf16.msra.mxu0 0
    %106 = vmatpush.bf16.msra.mxu0 0
    %107 = vmatpush.bf16.msra.mxu0 0
    %108 = vmatpush.bf16.msra.mxu0 %v79
    %109 = vmatpush.bf16.msra.mxu0 %v77
    %110 = vmatmul.bf16.gmra.mxu0 %v86
    %v111 = vpop.f32.mrf.mxu0
    %v112 = vadd.f32 0.0, %v111
    %v113 = vpop.f32.mrf.mxu0
    %v114 = vadd.f32 0.0, %v113
    %115 = vdwg.mxu0
    %v116 = vadd.f32 %v98, %v100
    %v117 = vrot.slane %v116, 4
    %v118 = vadd.f32 %v116, %v117
    %v119 = vrot.slane %v118, 2
    %v120 = vadd.f32 %v118, %v119
    %v121 = vrot.slane %v120, 1
    %v122 = vadd.f32 %v120, %v121
    %v123 = vadd.f32 %v112, %v114
    %v124 = vrot.slane %v123, 4
    %v125 = vadd.f32 %v123, %v124
    %v126 = vrot.slane %v125, 2
    %v127 = vadd.f32 %v125, %v126
    %v128 = vrot.slane %v127, 1
    %v129 = vadd.f32 %v127, %v128
    %v130 = vrcp.pop 16.0
    %v131 = vmul.f32 16.0, %v130
    %v132 = vsub.f32 1.0, %v131
    %v133 = vmul.f32 %v130, %v132
    %v134 = vadd.f32 %v130, %v133
    %vm135 = vweird.f32 %v130
    %v136 = vsel %vm135, %v130, %v134
    %v137 = vmul.f32 %v122, %v136
    %v138 = vmul.f32 %v129, %v136
    %v139 = vsub.f32 %v98, %v137
    %v140 = vsub.f32 %v112, %v138
    %v141 = vsub.f32 %v100, %v137
    %v142 = vsub.f32 %v114, %v138
    %v143 = vmul.f32 %v139, %v139
    %v144 = vmul.f32 %v140, %v140
    %v145 = vmul.f32 %v141, %v141
    %v146 = vmul.f32 %v142, %v142
    %v147 = vadd.f32 %v143, %v145
    %v148 = vrot.slane %v147, 4
    %v149 = vadd.f32 %v147, %v148
    %v150 = vrot.slane %v149, 2
    %v151 = vadd.f32 %v149, %v150
    %v152 = vrot.slane %v151, 1
    %v153 = vadd.f32 %v151, %v152
    %v154 = vadd.f32 %v144, %v146
    %v155 = vrot.slane %v154, 4
    %v156 = vadd.f32 %v154, %v155
    %v157 = vrot.slane %v156, 2
    %v158 = vadd.f32 %v156, %v157
    %v159 = vrot.slane %v158, 1
    %v160 = vadd.f32 %v158, %v159
    %v161 = vmul.f32 %v153, %v136
    %v162 = vmul.f32 %v160, %v136
    %v163 = vld [vmem:[%s3] sm:$0x3]
    %v164 = vadd.f32 %v161, 1e-05
    %v165 = vadd.f32 %v162, 1e-05
    %v166 = vrsqrt.pop %v164
    %v167 = vmul.f32 %v166, %v164
    %v168 = vmul.f32 %v167, %v166
    %v169 = vmul.f32 0.5, %v168
    %v170 = vsub.f32 1.5, %v169
    %v171 = vmul.f32 %v166, %v170
    %vm172 = vweird.f32 %v164
    %vm173 = vweird.f32 %v166
    %vm174 = vmor %vm172, %vm173
    %v175 = vsel %vm174, %v166, %v171
    %v176 = vrsqrt.pop %v165
    %v177 = vmul.f32 %v176, %v165
    %v178 = vmul.f32 %v177, %v176
    %v179 = vmul.f32 0.5, %v178
    %v180 = vsub.f32 1.5, %v179
    %v181 = vmul.f32 %v176, %v180
    %vm182 = vweird.f32 %v165
    %vm183 = vweird.f32 %v176
    %vm184 = vmor %vm182, %vm183
    %v185 = vsel %vm184, %v176, %v181
    %v188 = vrot.slane %v185, 7
    %vm189 = vcmask 1040384
    %v190 = vsel %vm189, %v175, %v188
    %v192 = vmul.f32 %v163, %v190
    %v193 = vld [vmem:[%s4] sm:$0x3]
    %v195 = vperm.slane %v192, 0
    %v196 = vperm.slane %v192, 1
    %v199 = vmul.f32 %v137, %v195
    %v200 = vmul.f32 %v138, %v196
    %v203 = vrot.slane %v200, 7
    %v204 = vsel %vm189, %v199, %v203
    %v206 = vsub.f32 %v193, %v204
    %v207 = vmul.f32 %v98, %v195
    %v208 = vmul.f32 %v112, %v196
    %v209 = vmul.f32 %v100, %v195
    %v210 = vmul.f32 %v114, %v196
    %v212 = vperm.slane %v206, 0
    %v213 = vperm.slane %v206, 1
    %v216 = vadd.f32 %v207, %v212
    %v217 = vadd.f32 %v208, %v213
    %v218 = vadd.f32 %v209, %v212
    %v219 = vadd.f32 %v210, %v213
    %v220 = vmax.f32 %v216, 0.0
    %v221 = vmax.f32 %v217, 0.0
    %v222 = vmax.f32 %v218, 0.0
    %v223 = vmax.f32 %v219, 0.0
    %224 = vst [vmem:[#allocation9] sm:$0xff] %v220
    %225 = vst [vmem:[#allocation9 + $0x8] sm:$0xff] %v221
    %226 = vst [vmem:[#allocation9 + $0x10] sm:$0xff] %v222
    %227 = vst [vmem:[#allocation9 + $0x18] sm:$0xff] %v223
    // Predicated region
    $region26: #{tpu_custom_call.1} parent=1 // pred_check
      _
    $region27: #{tpu_custom_call.1} parent=1 // pred_check_branch
      %229 = sbr.rel (0) target = $region29
    $region28: #{tpu_custom_call.1} parent=1 // pred_region
      %231 = vsyncadd [#allocation6], 0
      %s232 = sshll.u32 [#allocation9], 4
      %s233 = int_to_ptr.vmem [resolvable:$true] %s232
      %s234 = sshll.u32 %s5, 4
      %s235 = int_to_ptr.hbm [resolvable:$true] %s234
      %240 = dma.vmem_to_hbm [thread:$0]  %s233, 512, %s235, [#allocation6], 256, 256, 16
    $region29: #{tpu_custom_call.1} parent=1 // pred_fallthru
      _
    // Predicated region
    $region30: #{tpu_custom_call.1} parent=1 // pred_check
      _
    $region31: #{tpu_custom_call.1} parent=1 // pred_check_branch
      %242 = sbr.rel (0) target = $region33
    $region32: #{tpu_custom_call.1} parent=1 // pred_region
      %244 = dma.done [#allocation6], 512
    $region33: #{tpu_custom_call.1} parent=1 // pred_fallthru
      _
    %245 = vsyncpa [#allocation5], 1
    %246 = vsyncpa [#allocation8], 1
    %247 = vsyncpa [#allocation6], 1

</llo_original>
